<compile_context>
chip_gen: v6e
topology: v6e:2x2x1
jax: 0.10.0
libtpu: 0.0.40
codegen_flags: <defaults>
</compile_context>

<pallas_src>
import jax
import jax.numpy as jnp
from jax.experimental import pallas as pl
from jax.experimental.pallas import tpu as pltpu

IN_FEATURES = 16
OUT_FEATURES = 32

# Lane-dense packing factor: 8 batch rows per 128-lane row.
PACK = 8
PACKED_IN = PACK * IN_FEATURES     # 128  (exactly fills the lane dim / v5e MXU K)
PACKED_OUT = PACK * OUT_FEATURES   # 256  (unmasked, lane-dense output stores)

# Packed rows per grid step on the tiled path (== 8192 batch rows / step).
# Chosen to amortize the ~0.35 us per-step pipeline overhead; VMEM is not the
# binding constraint on any of v5e / v6e / v7x at this size.
_TM = 1024
_TILED_MIN_PACKED_ROWS = 2 * _TM   # need >= 2 grid steps for the grid to pay off


def _linear_kernel(x_ref, w_ref, b_ref, o_ref):
    # y = x @ W + b   (W already laid out as (in, out); bias broadcast once)
    y = jnp.dot(x_ref[...], w_ref[...], preferred_element_type=jnp.float32)
    o_ref[...] = (y + b_ref[...]).astype(o_ref.dtype)


def _linear_small(x, w_t, b2d):
    """Tiny-B (< PACK) whole-array path: no grid, no packing."""
    B = x.shape[0]
    vmem = pltpu.MemorySpace.VMEM
    return pl.pallas_call(
        _linear_kernel,
        out_shape=jax.ShapeDtypeStruct((B, OUT_FEATURES), x.dtype),
        in_specs=[
            pl.BlockSpec(memory_space=vmem),
            pl.BlockSpec(memory_space=vmem),
            pl.BlockSpec(memory_space=vmem),
        ],
        out_specs=pl.BlockSpec(memory_space=vmem),
    )(x, w_t, b2d)


def _linear_packed_single(x_packed, w_bd, b_packed):
    """Packed, single-invocation path (M < 2*_TM packed rows)."""
    M = x_packed.shape[0]
    vmem = pltpu.MemorySpace.VMEM
    return pl.pallas_call(
        _linear_kernel,
        out_shape=jax.ShapeDtypeStruct((M, PACKED_OUT), x_packed.dtype),
        in_specs=[
            pl.BlockSpec(memory_space=vmem),
            pl.BlockSpec(memory_space=vmem),
            pl.BlockSpec(memory_space=vmem),
        ],
        out_specs=pl.BlockSpec(memory_space=vmem),
    )(x_packed, w_bd, b_packed)


def _linear_packed_tiled(x_packed, w_bd, b_packed):
    """Packed, batch-tiled path; batch grid axis is megacore-parallel."""
    M = x_packed.shape[0]
    grid = (pl.cdiv(M, _TM),)
    cost = pl.CostEstimate(
        flops=2 * M * PACKED_IN * PACKED_OUT,
        transcendentals=0,
        bytes_accessed=4 * (M * PACKED_IN + M * PACKED_OUT
                            + PACKED_IN * PACKED_OUT + PACKED_OUT),
    )
    return pl.pallas_call(
        _linear_kernel,
        out_shape=jax.ShapeDtypeStruct((M, PACKED_OUT), x_packed.dtype),
        grid=grid,
        in_specs=[
            pl.BlockSpec((_TM, PACKED_IN), lambda i: (i, 0)),
            pl.BlockSpec((PACKED_IN, PACKED_OUT), lambda i: (0, 0)),  # resident
            pl.BlockSpec((1, PACKED_OUT), lambda i: (0, 0)),          # resident
        ],
        out_specs=pl.BlockSpec((_TM, PACKED_OUT), lambda i: (i, 0)),
        compiler_params=pltpu.CompilerParams(
            dimension_semantics=("parallel",)   # v7x: shard batch across 2 TCs
        ),
        cost_estimate=cost,
    )(x_packed, w_bd, b_packed)


def _block_diag_weight(w_t):
    """(16, 32) -> (128, 256): 8 copies of W^T along the block diagonal."""
    return jnp.kron(jnp.eye(PACK, dtype=w_t.dtype), w_t)


def linear_pallas(x, w_t, b):
    """x: (B, 16) f32, w_t: (16, 32) f32, b: (32,) f32 -> (B, 32) f32."""
    B = x.shape[0]
    b2d = b.reshape(1, OUT_FEATURES)

    if B < PACK:
        return _linear_small(x, w_t, b2d)

    # Pad B to a multiple of PACK, then view 8 consecutive rows as one
    # lane-dense 128-wide packed row (free row-major reshape).
    Bp = ((B + PACK - 1) // PACK) * PACK
    if Bp != B:
        x = jnp.pad(x, ((0, Bp - B), (0, 0)))
    M = Bp // PACK
    x_packed = x.reshape(M, PACKED_IN)
    w_bd = _block_diag_weight(w_t)                 # (128, 256), stays resident
    b_packed = jnp.tile(b2d, (1, PACK))            # (1, 256)

    if M >= _TILED_MIN_PACKED_ROWS:
        out_packed = _linear_packed_tiled(x_packed, w_bd, b_packed)
    else:
        out_packed = _linear_packed_single(x_packed, w_bd, b_packed)

    out = out_packed.reshape(Bp, OUT_FEATURES)
    return out[:B] if Bp != B else out


def model_forward(x, w_t, b):
    # x1 = linear(x); x2 = linear(x); return x2  ==  linear(x)
    return linear_pallas(x, w_t, b)


if __name__ == "__main__":
    key = jax.random.PRNGKey(0)
    kx, kw, kb = jax.random.split(key, 3)

    # Deterministic parameters matching nn.Linear(16, 32): weight (out, in).
    bound = 1.0 / jnp.sqrt(IN_FEATURES)
    w = jax.random.uniform(kw, (OUT_FEATURES, IN_FEATURES),
                           minval=-bound, maxval=bound, dtype=jnp.float32)
    b = jax.random.uniform(kb, (OUT_FEATURES,),
                           minval=-bound, maxval=bound, dtype=jnp.float32)
    w_t = w.T

    # Module's actual input: x = torch.rand(1, 16)  -> tiny-B path.
    x = jax.random.uniform(kx, (1, IN_FEATURES), dtype=jnp.float32)
    out = model_forward(x, w_t, b)
    jax.block_until_ready(out)
    ref = x @ w_t + b
    assert out.shape == (1, OUT_FEATURES)
    assert jnp.allclose(out, ref, atol=1e-5, rtol=1e-5)

    # Packed single-block path with B not a multiple of 8 (exercises padding).
    x_odd = jax.random.uniform(kx, (13, IN_FEATURES), dtype=jnp.float32)
    out_odd = model_forward(x_odd, w_t, b)
    jax.block_until_ready(out_odd)
    assert jnp.allclose(out_odd, x_odd @ w_t + b, atol=1e-5, rtol=1e-5)

    # Packed tiled path: 2 grid steps, so both v7x TensorCores get a step.
    B_big = 2 * _TM * PACK  # 16384 batch rows
    x_big = jax.random.uniform(kx, (B_big, IN_FEATURES), dtype=jnp.float32)
    out_big = model_forward(x_big, w_t, b)
    jax.block_until_ready(out_big)
    assert jnp.allclose(out_big, x_big @ w_t + b, atol=1e-5, rtol=1e-5)

    print("KERNEL_OK")
</pallas_src>

<mosaic_0001>
module attributes {stable_mosaic.version = 11 : i64} {
  func.func @_linear_kernel(%arg0: memref<1x16xf32, #tpu.memory_space<vmem>>, %arg1: memref<16x32xf32, #tpu.memory_space<vmem>>, %arg2: memref<1x32xf32, #tpu.memory_space<vmem>>, %arg3: memref<1x32xf32, #tpu.memory_space<vmem>>) attributes {dimension_semantics = [], scalar_prefetch = 0 : i64, scratch_operands = 0 : i64, tpu.core_type = #tpu.core_type<tc>} {
    %c0 = arith.constant 0 : index
    %c0_0 = arith.constant 0 : index
    %0 = vector.load %arg0[%c0, %c0_0] : memref<1x16xf32, #tpu.memory_space<vmem>>, vector<1x16xf32>
    %c0_1 = arith.constant 0 : index
    %c0_2 = arith.constant 0 : index
    %1 = vector.load %arg1[%c0_1, %c0_2] : memref<16x32xf32, #tpu.memory_space<vmem>>, vector<16x32xf32>
    %cst = arith.constant dense<0.000000e+00> : vector<1x32xf32>
    %2 = tpu.matmul %0, %1, %cst {dimension_numbers = #tpu.dot_dimension_numbers<[1], [0], [0], [1], [0, 0, 1, 1], [], []>} : vector<1x16xf32>, vector<16x32xf32>, vector<1x32xf32> -> vector<1x32xf32>
    %c0_3 = arith.constant 0 : index
    %c0_4 = arith.constant 0 : index
    %3 = vector.load %arg2[%c0_3, %c0_4] : memref<1x32xf32, #tpu.memory_space<vmem>>, vector<1x32xf32>
    %4 = arith.addf %2, %3 : vector<1x32xf32>
    %c0_5 = arith.constant 0 : index
    %c0_6 = arith.constant 0 : index
    %5 = vector.load %arg3[%c0_5, %c0_6] : memref<1x32xf32, #tpu.memory_space<vmem>>, vector<1x32xf32>
    tpu.vector_store %arg3[%c0_5, %c0_6], %4 {strides = array<i32>} : memref<1x32xf32, #tpu.memory_space<vmem>>, vector<1x32xf32>,
    return
  }
}

</mosaic_0001>

<llo_original>
// kernel: tpu_custom_call.1
$region0: #{tpu_custom_call.1}
  #allocation0 [shape = 'u32[]', space=smem, size = 0x4, offset = 0x4, fixed_abs, tag = 'smem constant byte address 0x4 - core index']
  #allocation1 [shape = 'u32[144,128]{1,0:T(1,128)}', space=vmem, size = 0x12000, scoped, tag = 'internal scratch']
  %s0 = inlined_call_operand.hbm [shape: f32[1,16], index: 0, kind: input, shape index: {}]
  %s1 = inlined_call_operand.hbm [shape: f32[16,32], index: 1, kind: input, shape index: {}]
  %s2 = inlined_call_operand.vmem [shape: f32[1,32], index: 2, kind: input, shape index: {}]
  %s3 = inlined_call_operand.hbm [shape: f32[1,32], index: 3, kind: output, shape index: {}]
  %s4 = sld [smem:[#allocation0]]
  $region30: #{tpu_custom_call.1} parent=0
    _
  %s6 = ssub.s32 1, %s4
  %s7 = scalar_select 0, %s6, %s4
  $region1: #{tpu_custom_call.1} parent=0
    #allocation2 [shape = 'u8[512]{0}', space=vmem, size = 0x400, scoped, tag = 'input window, operand 0, single buffered']
    #allocation3 [shape = 's32[1]{0}', space=sflag, size = 0x4, scoped, tag = 'scoped memory for tpu_custom_call.1']
    #allocation4 [shape = 's32[1]{0}', space=sflag, size = 0x4, scoped, tag = 'scoped memory for tpu_custom_call.1']
    #allocation5 [shape = 'u8[8192]{0}', space=vmem, size = 0x2000, scoped, tag = 'input window, operand 1, single buffered']
    #allocation6 [shape = 's32[1]{0}', space=sflag, size = 0x4, scoped, tag = 'scoped memory for tpu_custom_call.1']
    #allocation7 [shape = 'u8[512]{0}', space=vmem, size = 0x400, scoped, tag = 'output window, operand 0, single buffered']
    %8 = vsyncpa [#allocation3], 0
    %9 = vsyncpa [#allocation6], 0
    %10 = vsyncpa [#allocation4], 0
    // Predicated region
    $region2: #{tpu_custom_call.1} parent=1 // pred_check
      _
    $region3: #{tpu_custom_call.1} parent=1 // pred_check_branch
      %12 = sbr.rel (0) target = $region5
    $region4: #{tpu_custom_call.1} parent=1 // pred_region
      %s14 = ssub.s32 16, 16
      %15 = vsyncadd [#allocation3], %s14
      %s17 = sshll.u32 [#allocation2], 4
      %s18 = int_to_ptr.vmem [resolvable:$true] %s17
      %20 = dma.hbm_to_vmem [thread:$0]  %s0, 16, %s18, [#allocation3]
    $region5: #{tpu_custom_call.1} parent=1 // pred_fallthru
      _
    // Predicated region
    $region6: #{tpu_custom_call.1} parent=1 // pred_check
      _
    $region7: #{tpu_custom_call.1} parent=1 // pred_check_branch
      %22 = sbr.rel (0) target = $region9
    $region8: #{tpu_custom_call.1} parent=1 // pred_region
      %s24 = ssub.s32 256, 256
      %25 = vsyncadd [#allocation6], %s24
      %s26 = sshll.u32 [#allocation5], 4
      %s27 = int_to_ptr.vmem [resolvable:$true] %s26
      %32 = dma.hbm_to_vmem [thread:$0]  %s1, 256, %s27, [#allocation6], 128, 128, 8
    $region9: #{tpu_custom_call.1} parent=1 // pred_fallthru
      _
    // Predicated region
    $region10: #{tpu_custom_call.1} parent=1 // pred_check
      _
    $region11: #{tpu_custom_call.1} parent=1 // pred_check_branch
      %34 = sbr.rel (0) target = $region13
    $region12: #{tpu_custom_call.1} parent=1 // pred_region
      _
    $region13: #{tpu_custom_call.1} parent=1 // pred_fallthru
      _
    // Predicated region
    $region14: #{tpu_custom_call.1} parent=1 // pred_check
      _
    $region15: #{tpu_custom_call.1} parent=1 // pred_check_branch
      %36 = sbr.rel (0) target = $region17
    $region16: #{tpu_custom_call.1} parent=1 // pred_region
      %37 = dma.done [#allocation3], 16
    $region17: #{tpu_custom_call.1} parent=1 // pred_fallthru
      _
    // Predicated region
    $region18: #{tpu_custom_call.1} parent=1 // pred_check
      _
    $region19: #{tpu_custom_call.1} parent=1 // pred_check_branch
      %39 = sbr.rel (0) target = $region21
    $region20: #{tpu_custom_call.1} parent=1 // pred_region
      %40 = dma.done [#allocation6], 256
    $region21: #{tpu_custom_call.1} parent=1 // pred_fallthru
      _
    %v41 = vld [vmem:[#allocation2] sm:$0x1]
    %v42 = vld [vmem:[#allocation5] sm:$0xff]
    %v43 = vld [vmem:[#allocation5 + $0x8] sm:$0xff]
    %v44 = vld [vmem:[%s2] sm:$0x1]
    %vm45 = vcmask 130048
    %v47 = vsel %vm45, %v41, 0
    %49 = vmatprep.subr.mxu0 0.0
    %50 = vmatpush1.msra.mxu0 0.0
    %51 = vmatprep.subr.mxu0 0.0
    %52 = vmatpush1.msra.mxu0 0.0
    %53 = vmatprep.subr.mxu0 0.0
    %54 = vmatpush1.msra.mxu0 0.0
    %55 = vmatprep.subr.mxu0 0.0
    %56 = vmatpush1.msra.mxu0 0.0
    %57 = vmatprep.subr.mxu0 0.0
    %58 = vmatpush1.msra.mxu0 0.0
    %59 = vmatprep.subr.mxu0 0.0
    %60 = vmatpush1.msra.mxu0 0.0
    %61 = vmatprep.subr.mxu0 0.0
    %62 = vmatpush1.msra.mxu0 0.0
    %63 = vmatprep.subr.mxu0 0.0
    %64 = vmatpush1.msra.mxu0 0.0
    %65 = vmatprep.subr.mxu0 0.0
    %66 = vmatpush1.msra.mxu0 0.0
    %67 = vmatprep.subr.mxu0 0.0
    %68 = vmatpush1.msra.mxu0 0.0
    %69 = vmatprep.subr.mxu0 0.0
    %70 = vmatpush1.msra.mxu0 0.0
    %71 = vmatprep.subr.mxu0 0.0
    %72 = vmatpush1.msra.mxu0 0.0
    %73 = vmatprep.subr.mxu0 0.0
    %74 = vmatpush1.msra.mxu0 0.0
    %75 = vmatprep.subr.mxu0 0.0
    %76 = vmatpush1.msra.mxu0 0.0
    %77 = vmatprep.subr.mxu0 0.0
    %78 = vmatpush1.msra.mxu0 %v43
    %79 = vmatprep.subr.mxu0 0.0
    %80 = vmatpush1.msra.mxu0 %v42
    %81 = vmatprep.subr.mxu0 0.0
    %82 = vmatpush2.msra.mxu0 0.0
    %83 = vmatprep.subr.mxu0 0.0
    %84 = vmatpush2.msra.mxu0 0.0
    %85 = vmatprep.subr.mxu0 0.0
    %86 = vmatpush2.msra.mxu0 0.0
    %87 = vmatprep.subr.mxu0 0.0
    %88 = vmatpush2.msra.mxu0 0.0
    %89 = vmatprep.subr.mxu0 0.0
    %90 = vmatpush2.msra.mxu0 0.0
    %91 = vmatprep.subr.mxu0 0.0
    %92 = vmatpush2.msra.mxu0 0.0
    %93 = vmatprep.subr.mxu0 0.0
    %94 = vmatpush2.msra.mxu0 0.0
    %95 = vmatprep.subr.mxu0 0.0
    %96 = vmatpush2.msra.mxu0 0.0
    %97 = vmatprep.subr.mxu0 0.0
    %98 = vmatpush2.msra.mxu0 0.0
    %99 = vmatprep.subr.mxu0 0.0
    %100 = vmatpush2.msra.mxu0 0.0
    %101 = vmatprep.subr.mxu0 0.0
    %102 = vmatpush2.msra.mxu0 0.0
    %103 = vmatprep.subr.mxu0 0.0
    %104 = vmatpush2.msra.mxu0 0.0
    %105 = vmatprep.subr.mxu0 0.0
    %106 = vmatpush2.msra.mxu0 0.0
    %107 = vmatprep.subr.mxu0 0.0
    %108 = vmatpush2.msra.mxu0 0.0
    %109 = vmatprep.subr.mxu0 0.0
    %110 = vmatpush2.msra.mxu0 0.0
    %111 = vmatprep.subr.mxu0 0.0
    %112 = vmatpush2.msra.mxu0 0.0
    %113 = vmatprep.mubr.f32.mxu0 0.0
    %114 = vmatmul.mubr.f32.gmra.mxu0 %v47
    %v115 = vpop.f32.mrf.mxu0
    %v116 = vadd.f32 %v44, %v115
    %v117 = vpop.f32.mrf.mxu0
    %118 = vdwg.mxu0
    %vm119 = vcmask 253952
    %120 = vst.msk [vmem:[#allocation7] sm:$0x1] %vm119, %v116
    // Predicated region
    $region22: #{tpu_custom_call.1} parent=1 // pred_check
      _
    $region23: #{tpu_custom_call.1} parent=1 // pred_check_branch
      %122 = sbr.rel (0) target = $region25
    $region24: #{tpu_custom_call.1} parent=1 // pred_region
      %s124 = ssub.s32 16, 16
      %125 = vsyncadd [#allocation4], %s124
      %s127 = sshll.u32 [#allocation7], 4
      %s128 = int_to_ptr.vmem [resolvable:$true] %s127
      %130 = dma.vmem_to_hbm [thread:$0]  %s128, 16, %s3, [#allocation4]
    $region25: #{tpu_custom_call.1} parent=1 // pred_fallthru
      _
    // Predicated region
    $region26: #{tpu_custom_call.1} parent=1 // pred_check
      _
    $region27: #{tpu_custom_call.1} parent=1 // pred_check_branch
      %132 = sbr.rel (0) target = $region29
    $region28: #{tpu_custom_call.1} parent=1 // pred_region
      %133 = dma.done [#allocation4], 16
    $region29: #{tpu_custom_call.1} parent=1 // pred_fallthru
      _
    %134 = vsyncpa [#allocation3], 1
    %135 = vsyncpa [#allocation6], 1
    %136 = vsyncpa [#allocation4], 1

</llo_original>
